<compile_context>
chip_gen: v6e
topology: v6e:2x2x1
jax: 0.10.0
libtpu: 0.0.40
codegen_flags: <defaults>
</compile_context>

<pallas_src>
import functools

import jax
import jax.numpy as jnp
from jax import lax
from jax.experimental import pallas as pl
from jax.experimental.pallas import tpu as pltpu


def _round_up(v, m):
    return (v + m - 1) // m * m


def _vmem_capacity_bytes():
    try:
        return int(pltpu.get_tpu_info().vmem_capacity_bytes)
    except Exception:
        return 64 * 1024 * 1024  # conservative default (v7x per-core VMEM)


# --------------------------------------------------------------------------
# Fused single-pass kernel: one full (1, C, T) slab per batch element.
# --------------------------------------------------------------------------
def _gln_fused_kernel(x_ref, gamma_ref, beta_ref, o_ref, *, inv_count, eps):
    x = x_ref[...].astype(jnp.float32)            # (1, C, T)
    mean = jnp.sum(x) * inv_count                 # scalar
    diff = x - mean
    var = jnp.sum(diff * diff) * inv_count        # exact two-pass variance
    rstd = lax.rsqrt(var + eps)                   # EUP

    gamma = gamma_ref[...].astype(jnp.float32)    # (C, 1)
    beta = beta_ref[...].astype(jnp.float32)      # (C, 1)
    scale = gamma * rstd                          # (C, 1)
    a = scale[None, :, :]                         # (1, C, 1) hoisted broadcast
    b = (beta - mean * scale)[None, :, :]         # (1, C, 1)

    # Re-read x for the normalize/store phase (bounds the live range of diff).
    o_ref[...] = (x_ref[...].astype(jnp.float32) * a + b).astype(o_ref.dtype)


# --------------------------------------------------------------------------
# Tiled fallback, phase 1: accumulate sum / sumsq over T tiles, emit folded
# per-channel (a, b) = (gamma*rstd, beta - mean*gamma*rstd) on the last tile.
# --------------------------------------------------------------------------
def _gln_stats_kernel(x_ref, gamma_ref, beta_ref, a_ref, b_ref,
                      sum_ref, sq_ref, *, valid_t, tile_t, inv_count, eps):
    t = pl.program_id(1)

    @pl.when(t == 0)
    def _():
        sum_ref[...] = jnp.zeros_like(sum_ref)
        sq_ref[...] = jnp.zeros_like(sq_ref)

    x = x_ref[...].astype(jnp.float32)            # (1, C, tile_t)
    if valid_t % tile_t != 0:
        # Ragged last tile: zero out the out-of-range lanes before accumulating.
        rem = valid_t - t * tile_t
        t_idx = lax.broadcasted_iota(jnp.int32, (1, 1, tile_t), 2)
        x = jnp.where(t_idx < rem, x, 0.0)

    sum_ref[...] = sum_ref[...] + jnp.sum(x)
    sq_ref[...] = sq_ref[...] + jnp.sum(x * x)

    @pl.when(t == pl.num_programs(1) - 1)
    def _():
        # One-pass variance (zero-padded tiles contribute 0 to both sums).
        mean = sum_ref[...] * inv_count                              # (1, 1)
        var = jnp.maximum(sq_ref[...] * inv_count - mean * mean, 0.0)
        rstd = lax.rsqrt(var + eps)                                  # (1, 1)
        gamma = gamma_ref[...].astype(jnp.float32)                   # (C, 1)
        beta = beta_ref[...].astype(jnp.float32)                     # (C, 1)
        scale = gamma * rstd                                         # (C, 1)
        a_ref[...] = scale[None, :, :]                               # (1, C, 1)
        b_ref[...] = (beta - mean * scale)[None, :, :]               # (1, C, 1)


# --------------------------------------------------------------------------
# Tiled fallback, phase 2: elementwise normalize with the folded scale/bias.
# --------------------------------------------------------------------------
def _gln_apply_kernel(x_ref, a_ref, b_ref, o_ref):
    a = a_ref[...]                                # (1, C, 1) f32
    b = b_ref[...]                                # (1, C, 1) f32
    o_ref[...] = (x_ref[...].astype(jnp.float32) * a + b).astype(o_ref.dtype)


# --------------------------------------------------------------------------
# Wrapper
# --------------------------------------------------------------------------
def global_channel_layer_norm(x, gamma, beta, *, eps=1e-8, tile_t=None,
                              force_tiled=False):
    """x: (N, C, T); gamma, beta: (C,). Returns (N, C, T)."""
    N, C, T = x.shape
    gamma2d = gamma.reshape(C, 1)
    beta2d = beta.reshape(C, 1)
    inv_count = 1.0 / float(C * T)

    itemsize = jnp.dtype(x.dtype).itemsize
    usable_vmem = int(_vmem_capacity_bytes() * 0.85)  # headroom for compiler scratch

    # Fused-path budget: double-buffered in + out slabs + f32 working copies.
    slab_bytes = C * T * itemsize
    fused_need = 4 * slab_bytes + 2 * C * T * 4 + (2 << 20)

    if not force_tiled and fused_need <= usable_vmem:
        kernel = functools.partial(_gln_fused_kernel, inv_count=inv_count, eps=eps)
        return pl.pallas_call(
            kernel,
            out_shape=jax.ShapeDtypeStruct((N, C, T), x.dtype),
            grid_spec=pltpu.PrefetchScalarGridSpec(
                num_scalar_prefetch=0,
                grid=(N,),
                in_specs=[
                    pl.BlockSpec((1, C, T), lambda n: (n, 0, 0)),
                    pl.BlockSpec((C, 1), lambda n: (0, 0)),
                    pl.BlockSpec((C, 1), lambda n: (0, 0)),
                ],
                out_specs=pl.BlockSpec((1, C, T), lambda n: (n, 0, 0)),
            ),
            compiler_params=pltpu.CompilerParams(
                dimension_semantics=("parallel",),
                vmem_limit_bytes=min(max(fused_need, 32 << 20), usable_vmem),
            ),
        )(x, gamma2d, beta2d)

    # ---------------- T-tiled two-phase fallback ----------------
    if tile_t is None:
        tile_t = 512                       # 512-lane tiles ~ HBM roofline
    tile_t = max(128, (tile_t // 128) * 128)
    tile_t = min(tile_t, _round_up(T, 128))

    def _tiled_need(tt):
        tile_bytes = C * tt * itemsize
        return 4 * tile_bytes + 2 * C * tt * 4 + (2 << 20)

    while tile_t > 128 and _tiled_need(tile_t) > usable_vmem:
        tile_t //= 2

    num_t = pl.cdiv(T, tile_t)
    tiled_vmem = min(max(_tiled_need(tile_t), 32 << 20), usable_vmem)

    stats_kernel = functools.partial(
        _gln_stats_kernel, valid_t=T, tile_t=tile_t, inv_count=inv_count, eps=eps)

    a_all, b_all = pl.pallas_call(
        stats_kernel,
        out_shape=(jax.ShapeDtypeStruct((N, C, 1), jnp.float32),
                   jax.ShapeDtypeStruct((N, C, 1), jnp.float32)),
        grid_spec=pltpu.PrefetchScalarGridSpec(
            num_scalar_prefetch=0,
            grid=(N, num_t),
            in_specs=[
                pl.BlockSpec((1, C, tile_t), lambda n, t: (n, 0, t)),
                pl.BlockSpec((C, 1), lambda n, t: (0, 0)),
                pl.BlockSpec((C, 1), lambda n, t: (0, 0)),
            ],
            out_specs=[
                pl.BlockSpec((1, C, 1), lambda n, t: (n, 0, 0)),
                pl.BlockSpec((1, C, 1), lambda n, t: (n, 0, 0)),
            ],
            scratch_shapes=[pltpu.VMEM((1, 1), jnp.float32),
                            pltpu.VMEM((1, 1), jnp.float32)],
        ),
        compiler_params=pltpu.CompilerParams(
            dimension_semantics=("parallel", "arbitrary"),
            vmem_limit_bytes=tiled_vmem,
        ),
    )(x, gamma2d, beta2d)

    return pl.pallas_call(
        _gln_apply_kernel,
        out_shape=jax.ShapeDtypeStruct((N, C, T), x.dtype),
        grid_spec=pltpu.PrefetchScalarGridSpec(
            num_scalar_prefetch=0,
            grid=(N, num_t),
            in_specs=[
                pl.BlockSpec((1, C, tile_t), lambda n, t: (n, 0, t)),
                pl.BlockSpec((1, C, 1), lambda n, t: (n, 0, 0)),
                pl.BlockSpec((1, C, 1), lambda n, t: (n, 0, 0)),
            ],
            out_specs=pl.BlockSpec((1, C, tile_t), lambda n, t: (n, 0, t)),
        ),
        compiler_params=pltpu.CompilerParams(
            dimension_semantics=("parallel", "parallel"),
            vmem_limit_bytes=tiled_vmem,
        ),
    )(x, a_all, b_all)


def _reference(x, gamma, beta):
    xf = x.astype(jnp.float32)
    mean = jnp.mean(xf, axis=(1, 2), keepdims=True)
    var = jnp.mean((xf - mean) ** 2, axis=(1, 2), keepdims=True)
    normed = (xf - mean) / jnp.sqrt(var + 1e-8)
    return (gamma[None, :, None] * normed + beta[None, :, None]).astype(x.dtype)


if __name__ == "__main__":
    # --- main test: module-consistent small shape, fused path ---
    key = jax.random.PRNGKey(0)
    N, C, T = 2, 4, 16
    x = jax.random.normal(key, (N, C, T), dtype=jnp.float32)

    # Parameters exactly as in nn.Module __init__: gamma=ones(C), beta=zeros(C)
    gamma = jnp.ones((C,), dtype=jnp.float32)
    beta = jnp.zeros((C,), dtype=jnp.float32)

    out = global_channel_layer_norm(x, gamma, beta)
    out = jax.block_until_ready(out)

    ref = _reference(x, gamma, beta)
    assert out.shape == (N, C, T)
    assert jnp.allclose(out, ref, atol=1e-5, rtol=1e-5), "fused path mismatch"

    # --- extra validation: force the T-tiled fallback (ragged last tile) ---
    k1, k2, k3 = jax.random.split(jax.random.PRNGKey(0), 3)
    N2, C2, T2 = 2, 6, 300
    x2 = jax.random.normal(k1, (N2, C2, T2), dtype=jnp.float32)
    gamma2 = 1.0 + 0.1 * jax.random.normal(k2, (C2,), dtype=jnp.float32)
    beta2 = 0.1 * jax.random.normal(k3, (C2,), dtype=jnp.float32)

    out2 = jax.block_until_ready(
        global_channel_layer_norm(x2, gamma2, beta2, tile_t=128, force_tiled=True))
    ref2 = _reference(x2, gamma2, beta2)
    assert out2.shape == (N2, C2, T2)
    assert jnp.allclose(out2, ref2, atol=1e-4, rtol=1e-4), "tiled path mismatch"

    print("KERNEL_OK")
</pallas_src>

<mosaic_0001>
module attributes {stable_mosaic.version = 11 : i64} {
  func.func @_gln_fused_kernel(%arg0: i32, %arg1: memref<1x4x16xf32, #tpu.memory_space<vmem>>, %arg2: memref<4x1xf32, #tpu.memory_space<vmem>>, %arg3: memref<4x1xf32, #tpu.memory_space<vmem>>, %arg4: memref<1x4x16xf32, #tpu.memory_space<vmem>>) attributes {dimension_semantics = [#tpu.dimension_semantics<parallel>], iteration_bounds = array<i64: 2>, scalar_prefetch = 0 : i64, scratch_operands = 0 : i64, tpu.core_type = #tpu.core_type<tc>, window_params = [{transform_indices = @transform_0, window_bounds = array<i64: 1, 4, 16>}, {pipeline_mode = #tpu.pipeline_mode<synchronous>, transform_indices = @transform_1, window_bounds = array<i64: 4, 1>}, {pipeline_mode = #tpu.pipeline_mode<synchronous>, transform_indices = @transform_2, window_bounds = array<i64: 4, 1>}, {transform_indices = @transform_3, window_bounds = array<i64: 1, 4, 16>}]} {
    %c0 = arith.constant 0 : index
    %c0_0 = arith.constant 0 : index
    %c0_1 = arith.constant 0 : index
    %0 = vector.load %arg1[%c0, %c0_0, %c0_1] : memref<1x4x16xf32, #tpu.memory_space<vmem>>, vector<1x4x16xf32>
    %1 = vector.shape_cast %0 : vector<1x4x16xf32> to vector<1x1x4x16xf32>
    %cst = arith.constant dense<0.000000e+00> : vector<1xf32>
    %2 = vector.multi_reduction <add>, %1, %cst [1, 2, 3] : vector<1x1x4x16xf32> to vector<1xf32>
    %3 = vector.shape_cast %2 : vector<1xf32> to vector<1x1x1x1xf32>
    %4 = vector.extract %3[0, 0, 0, 0] : f32 from vector<1x1x1x1xf32>
    %cst_2 = arith.constant 1.562500e-02 : f32
    %5 = arith.mulf %4, %cst_2 : f32
    %6 = vector.broadcast %5 : f32 to vector<1x4x16xf32>
    %7 = arith.subf %0, %6 : vector<1x4x16xf32>
    %8 = arith.mulf %7, %7 : vector<1x4x16xf32>
    %9 = vector.shape_cast %8 : vector<1x4x16xf32> to vector<1x1x4x16xf32>
    %cst_3 = arith.constant dense<0.000000e+00> : vector<1xf32>
    %10 = vector.multi_reduction <add>, %9, %cst_3 [1, 2, 3] : vector<1x1x4x16xf32> to vector<1xf32>
    %11 = vector.shape_cast %10 : vector<1xf32> to vector<1x1x1x1xf32>
    %12 = vector.extract %11[0, 0, 0, 0] : f32 from vector<1x1x1x1xf32>
    %cst_4 = arith.constant 1.562500e-02 : f32
    %13 = arith.mulf %12, %cst_4 : f32
    %cst_5 = arith.constant 9.99999993E-9 : f32
    %14 = arith.addf %13, %cst_5 : f32
    %15 = math.rsqrt %14 : f32
    %c0_6 = arith.constant 0 : index
    %c0_7 = arith.constant 0 : index
    %16 = vector.load %arg2[%c0_6, %c0_7] : memref<4x1xf32, #tpu.memory_space<vmem>>, vector<4x1xf32>
    %c0_8 = arith.constant 0 : index
    %c0_9 = arith.constant 0 : index
    %17 = vector.load %arg3[%c0_8, %c0_9] : memref<4x1xf32, #tpu.memory_space<vmem>>, vector<4x1xf32>
    %18 = vector.broadcast %15 : f32 to vector<4x1xf32>
    %19 = arith.mulf %16, %18 : vector<4x1xf32>
    %20 = vector.shape_cast %19 : vector<4x1xf32> to vector<1x4x1xf32>
    %21 = vector.broadcast %5 : f32 to vector<4x1xf32>
    %22 = arith.mulf %21, %19 : vector<4x1xf32>
    %23 = arith.subf %17, %22 : vector<4x1xf32>
    %24 = vector.shape_cast %23 : vector<4x1xf32> to vector<1x4x1xf32>
    %c0_10 = arith.constant 0 : index
    %c0_11 = arith.constant 0 : index
    %c0_12 = arith.constant 0 : index
    %25 = vector.load %arg1[%c0_10, %c0_11, %c0_12] : memref<1x4x16xf32, #tpu.memory_space<vmem>>, vector<1x4x16xf32>
    %26 = vector.broadcast %20 : vector<1x4x1xf32> to vector<1x4x16xf32>
    %27 = arith.mulf %25, %26 : vector<1x4x16xf32>
    %28 = vector.broadcast %24 : vector<1x4x1xf32> to vector<1x4x16xf32>
    %29 = arith.addf %27, %28 : vector<1x4x16xf32>
    %c0_13 = arith.constant 0 : index
    %c0_14 = arith.constant 0 : index
    %c0_15 = arith.constant 0 : index
    %30 = vector.load %arg4[%c0_13, %c0_14, %c0_15] : memref<1x4x16xf32, #tpu.memory_space<vmem>>, vector<1x4x16xf32>
    tpu.vector_store %arg4[%c0_13, %c0_14, %c0_15], %29 {strides = array<i32>} : memref<1x4x16xf32, #tpu.memory_space<vmem>>, vector<1x4x16xf32>,
    return
  }
  func.func @transform_0(%arg0: i32) -> (i32, i32, i32) {
    %c0_i32 = arith.constant 0 : i32
    %c0_i32_0 = arith.constant 0 : i32
    %c0_i32_1 = arith.constant 0 : i32
    return %arg0, %c0_i32, %c0_i32_0 : i32, i32, i32
  }
  func.func @transform_1(%arg0: i32) -> (i32, i32) {
    %c0_i32 = arith.constant 0 : i32
    %c0_i32_0 = arith.constant 0 : i32
    %c0_i32_1 = arith.constant 0 : i32
    return %c0_i32, %c0_i32_0 : i32, i32
  }
  func.func @transform_2(%arg0: i32) -> (i32, i32) {
    %c0_i32 = arith.constant 0 : i32
    %c0_i32_0 = arith.constant 0 : i32
    %c0_i32_1 = arith.constant 0 : i32
    return %c0_i32, %c0_i32_0 : i32, i32
  }
  func.func @transform_3(%arg0: i32) -> (i32, i32, i32) {
    %c0_i32 = arith.constant 0 : i32
    %c0_i32_0 = arith.constant 0 : i32
    %c0_i32_1 = arith.constant 0 : i32
    return %arg0, %c0_i32, %c0_i32_0 : i32, i32, i32
  }
}

</mosaic_0001>

<llo_original>
// kernel: tpu_custom_call.1
$region0: #{tpu_custom_call.1}
  #allocation0 [shape = 'u32[]', space=smem, size = 0x4, offset = 0x4, fixed_abs, tag = 'smem constant byte address 0x4 - core index']
  #allocation1 [shape = 'u32[144,128]{1,0:T(1,128)}', space=vmem, size = 0x12000, scoped, tag = 'internal scratch']
  %s0 = inlined_call_operand.vmem [shape: f32[2,4,16], index: 0, kind: input, shape index: {}]
  %s1 = inlined_call_operand.vmem [shape: f32[4,1], index: 1, kind: input, shape index: {}]
  %s2 = inlined_call_operand.vmem [shape: f32[4,1], index: 2, kind: input, shape index: {}]
  %s3 = inlined_call_operand.hbm [shape: f32[2,4,16], index: 3, kind: output, shape index: {}]
  %s4 = sld [smem:[#allocation0]]
  $region45: #{tpu_custom_call.1} parent=0
    _
  %s6 = ssub.s32 1, %s4
  %s7 = scalar_select 0, %s6, %s4
  $region1: #{tpu_custom_call.1} parent=0
    #allocation2 [shape = 'u8[4096]{0}', space=vmem, size = 0x1000, scoped, tag = 'output window, operand 0']
    #allocation3 [shape = 's32[2]{0}', space=sflag, size = 0x8, scoped, tag = 'scoped memory for tpu_custom_call.1']
    %8 = vsyncpa [#allocation3], 0
    %s9 = scalar_lea.sflag [#allocation3], 1
    %10 = vsyncpa %s9, 0
    loop: start=0, step=1, limit=4
    $region2: #{tpu_custom_call.1} parent=1 // loop_pre_header
      _
    $region3: #{tpu_custom_call.1} parent=1 // loop_header
      %s12 = sphi 0, %s16
      %p13 = scmp.ge.s32.totalorder %s12, 4
      %s22 = sphi 0, %s24
      %s25 = sphi 0, %s22
      %s26 = sphi 0, %s25
      %s42 = sphi 0, %s26
      %s46 = sphi 0, %s46
      %s48 = sphi 0, %s46
      %s49 = sphi 0, %s48
      %s63 = sphi 0, %s49
      %s67 = sphi 0, %s67
      %s69 = sphi 0, %s67
      %s70 = sphi 0, %s69
      %s84 = sphi 0, %s70
      %s90 = sphi 0, %s92
      %s93 = sphi 0, %s90
      %s94 = sphi 0, %s93
      %s110 = sphi 0, %s94
    $region4: #{tpu_custom_call.1} parent=1 // loop_header_branch
      %15 = sbr.rel (%p13) target = $region8
    $region5: #{tpu_custom_call.1} parent=1 // loop_body
      %s17 = ssub.s32 %s12, 1
      %s18 = ssub.s32 %s12, 2
      %s19 = sadd.s32 %s12, 1
      %s20 = ssub.s32 %s12, %s19
      %p21 = scmp.eq.s32.totalorder %s20, 0
      %s23 = sadd.s32 %s22, 1
      %s24 = scalar_select %p21, %s22, %s23
      %p27 = pneg %p21
      %p28 = scmp.eq.s32.totalorder %s12, 1
      %p29 = por %p27, %p28
      %p30 = scmp.ne.s32.totalorder %s22, %s25
      %p31 = scmp.eq.s32.totalorder %s12, 0
      %p32 = por %p30, %p31
      %p33 = scmp.ne.s32.totalorder %s22, %s25
      %p34 = scmp.eq.s32.totalorder %s17, 1
      %p35 = por %p33, %p34
      %p36 = scmp.ne.s32.totalorder %s25, %s26
      %p37 = scmp.eq.s32.totalorder %s17, 0
      %p38 = por %p36, %p37
      %p39 = scmp.ne.s32.totalorder %s25, %s26
      %p40 = scmp.eq.s32.totalorder %s18, 1
      %p41 = por %p39, %p40
      %p43 = scmp.ne.s32.totalorder %s26, %s42
      %p44 = scmp.eq.s32.totalorder %s18, 0
      %p45 = por %p43, %p44
      %s47 = sadd.s32 %s46, 1
      %p50 = scmp.eq.s32.totalorder %s12, 1
      %p51 = scmp.ne.s32.totalorder %s46, %s48
      %p52 = scmp.eq.s32.totalorder %s12, 0
      %p53 = por %p51, %p52
      %p54 = scmp.ne.s32.totalorder %s46, %s48
      %p55 = scmp.eq.s32.totalorder %s17, 1
      %p56 = por %p54, %p55
      %p57 = scmp.ne.s32.totalorder %s48, %s49
      %p58 = scmp.eq.s32.totalorder %s17, 0
      %p59 = por %p57, %p58
      %p60 = scmp.ne.s32.totalorder %s48, %s49
      %p61 = scmp.eq.s32.totalorder %s18, 1
      %p62 = por %p60, %p61
      %p64 = scmp.ne.s32.totalorder %s49, %s63
      %p65 = scmp.eq.s32.totalorder %s18, 0
      %p66 = por %p64, %p65
      %s68 = sadd.s32 %s67, 1
      %p71 = scmp.eq.s32.totalorder %s12, 1
      %p72 = scmp.ne.s32.totalorder %s67, %s69
      %p73 = scmp.eq.s32.totalorder %s12, 0
      %p74 = por %p72, %p73
      %p75 = scmp.ne.s32.totalorder %s67, %s69
      %p76 = scmp.eq.s32.totalorder %s17, 1
      %p77 = por %p75, %p76
      %p78 = scmp.ne.s32.totalorder %s69, %s70
      %p79 = scmp.eq.s32.totalorder %s17, 0
      %p80 = por %p78, %p79
      %p81 = scmp.ne.s32.totalorder %s69, %s70
      %p82 = scmp.eq.s32.totalorder %s18, 1
      %p83 = por %p81, %p82
      %p85 = scmp.ne.s32.totalorder %s70, %s84
      %p86 = scmp.eq.s32.totalorder %s18, 0
      %p87 = por %p85, %p86
      %s88 = ssub.s32 %s12, %s19
      %p89 = scmp.eq.s32.totalorder %s88, 0
      %s91 = sadd.s32 %s90, 1
      %s92 = scalar_select %p89, %s90, %s91
      %p95 = pneg %p89
      %p96 = scmp.eq.s32.totalorder %s12, 1
      %p97 = por %p95, %p96
      %p98 = scmp.ne.s32.totalorder %s90, %s93
      %p99 = scmp.eq.s32.totalorder %s12, 0
      %p100 = por %p98, %p99
      %p101 = scmp.ne.s32.totalorder %s90, %s93
      %p102 = scmp.eq.s32.totalorder %s17, 1
      %p103 = por %p101, %p102
      %p104 = scmp.ne.s32.totalorder %s93, %s94
      %p105 = scmp.eq.s32.totalorder %s17, 0
      %p106 = por %p104, %p105
      %p107 = scmp.ne.s32.totalorder %s93, %s94
      %p108 = scmp.eq.s32.totalorder %s18, 1
      %p109 = por %p107, %p108
      %p111 = scmp.ne.s32.totalorder %s94, %s110
      %p112 = scmp.eq.s32.totalorder %s18, 0
      %p113 = por %p111, %p112
      %p114 = scmp.le.s32.totalorder 1, %s12
      %p115 = scmp.lt.s32.totalorder %s12, 3
      %p116 = pnand %p114, %p115
      %p117 = pneg %p116
      // Predicated region
      $region9: #{tpu_custom_call.1} parent=5 // pred_check
        _
      $region10: #{tpu_custom_call.1} parent=5 // pred_check_branch
        %119 = sbr.rel (%p116) target = $region12
      $region11: #{tpu_custom_call.1} parent=5 // pred_region
        %s120 = ssub.s32 %s12, 1
        // Predicated region
        $region13: #{tpu_custom_call.1} parent=11 // pred_check
          %p121 = pneg %p59
        $region14: #{tpu_custom_call.1} parent=11 // pred_check_branch
          %123 = sbr.rel (%p121) target = $region16
        $region15: #{tpu_custom_call.1} parent=11 // pred_region
          _
        $region16: #{tpu_custom_call.1} parent=11 // pred_fallthru
          _
        // Predicated region
        $region17: #{tpu_custom_call.1} parent=11 // pred_check
          %p124 = pneg %p80
        $region18: #{tpu_custom_call.1} parent=11 // pred_check_branch
          %126 = sbr.rel (%p124) target = $region20
        $region19: #{tpu_custom_call.1} parent=11 // pred_region
          _
        $region20: #{tpu_custom_call.1} parent=11 // pred_fallthru
          _
      $region12: #{tpu_custom_call.1} parent=5 // pred_fallthru
        _
      %p127 = scmp.lt.s32.totalorder %s12, 2
      // Predicated region
      $region21: #{tpu_custom_call.1} parent=5 // pred_check
        %p128 = pneg %p127
      $region22: #{tpu_custom_call.1} parent=5 // pred_check_branch
        %130 = sbr.rel (%p128) target = $region24
      $region23: #{tpu_custom_call.1} parent=5 // pred_region
        // Predicated region
        $region25: #{tpu_custom_call.1} parent=23 // pred_check
          %p131 = pneg %p32
        $region26: #{tpu_custom_call.1} parent=23 // pred_check_branch
          %133 = sbr.rel (%p131) target = $region28
        $region27: #{tpu_custom_call.1} parent=23 // pred_region
          %p134 = scmp.lt.s32.totalorder %s12, 1
          %s135 = scalar_select %p134, %s12, 1
          %s136 = smul.addr %s135, 4
          %s137 = scalar_lea.vmem %s0, %s136
        $region28: #{tpu_custom_call.1} parent=23 // pred_fallthru
          _
      $region24: #{tpu_custom_call.1} parent=5 // pred_fallthru
        _
      %p138 = scmp.le.s32.totalorder 1, %s12
      %p139 = scmp.lt.s32.totalorder %s12, 3
      %p140 = pnand %p138, %p139
      %p141 = pneg %p140
      // Predicated region
      $region29: #{tpu_custom_call.1} parent=5 // pred_check
        _
      $region30: #{tpu_custom_call.1} parent=5 // pred_check_branch
        %143 = sbr.rel (%p140) target = $region32
      $region31: #{tpu_custom_call.1} parent=5 // pred_region
        %s144 = ssub.s32 %s12, 1
        %p145 = scmp.lt.s32.totalorder %s17, 1
        %s146 = scalar_select %p145, %s17, 1
        %s147 = smul.addr %s146, 4
        %s148 = scalar_lea.vmem %s0, %s147
        %p149 = pneg %p38
        %p150 = pneg %p35
        %p151 = pneg %p59
        %p152 = pneg %p56
        %p153 = pneg %p80
        %p154 = pneg %p77
        %p155 = pneg %p106
        %p156 = pneg %p103
        %s157 = sand.u32 %s93, 1
        %s158 = scalar_lea.sflag [#allocation3], %s157
        %s159 = sand.u32 %s93, 1
        %s160 = smul.addr %s159, 4
        %s161 = scalar_lea.vmem [#allocation2], %s160
        %p162 = scmp.lt.s32.totalorder %s17, 1
        %s163 = scalar_select %p162, %s17, 1
        %s164 = smul.addr %s163, 4
        %s165 = scalar_lea.vmem %s0, %s164
        %v166 = vld [vmem:[%s165] sm:$0xf]
        %vm167 = vcmask 125952
        %v168 = vsel %vm167, %v166, 0.0
        %169 = vadd.xlane.f32.xlu0 %v168
        %v170 = vpop.xlane.xlu0 %169
        %v171 = vrot.slane %v170, 4
        %v172 = vadd.f32 %v170, %v171
        %v173 = vrot.slane %v172, 2
        %v174 = vadd.f32 %v172, %v173
        %v175 = vrot.slane %v174, 1
        %v176 = vadd.f32 %v174, %v175
        %s177 = vtos %v176
        %s178 = smul.f32 %s177, 0.015625
        %v179 = vstv %s178
        %v180 = vsub.f32 %v166, %v179
        %v181 = vmul.f32 %v180, %v180
        %v182 = vsel %vm167, %v181, 0.0
        %183 = vadd.xlane.f32.xlu0 %v182
        %v184 = vpop.xlane.xlu0 %183
        %v185 = vrot.slane %v184, 4
        %v186 = vadd.f32 %v184, %v185
        %v187 = vrot.slane %v186, 2
        %v188 = vadd.f32 %v186, %v187
        %v189 = vrot.slane %v188, 1
        %v190 = vadd.f32 %v188, %v189
        %s191 = vtos %v190
        %s192 = smul.f32 %s191, 0.015625
        %s193 = sadd.f32 %s192, 1e-08
        %v194 = vstv %s193
        %v195 = vrsqrt.pop %v194
        %s196 = vtos %v195
        %v197 = vld [vmem:[%s1] sm:$0xf]
        %v198 = vld [vmem:[%s2] sm:$0xf]
        %v199 = vstv %s196
        %v200 = vmul.f32 %v197, %v199
        %v201 = vmul.f32 %v179, %v200
        %v202 = vsub.f32 %v198, %v201
        %204 = vset.pattern.permute.xlu0 0
        %205 = vperm.xlu0 %204, %v200
        %v206 = vpop.permute.xlu0 %205
        %v208 = vmul.f32 %v166, %v206
        %210 = vset.pattern.permute.xlu0 0
        %211 = vperm.xlu0 %210, %v202
        %v212 = vpop.permute.xlu0 %211
        %v214 = vadd.f32 %v208, %v212
        %215 = vst.msk [vmem:[%s161] sm:$0xf] %vm167, %v214
        %s216 = sand.u32 %s93, 1
        %s217 = scalar_lea.sflag [#allocation3], %s216
        %s218 = sand.u32 %s93, 1
        %s219 = smul.addr %s218, 4
        %s220 = scalar_lea.vmem [#allocation2], %s219
        // Predicated region
        $region33: #{tpu_custom_call.1} parent=31 // pred_check
          %p221 = pneg %p103
        $region34: #{tpu_custom_call.1} parent=31 // pred_check_branch
          %223 = sbr.rel (%p221) target = $region36
        $region35: #{tpu_custom_call.1} parent=31 // pred_region
          %s225 = ssub.s32 64, 64
          %226 = vsyncadd %s217, %s225
          %s227 = smul.addr %s17, 64
          %s228 = scalar_lea.hbm %s3, %s227
          %s230 = sshll.u32 %s220, 4
          %s231 = int_to_ptr.vmem [resolvable:$true] %s230
          %233 = dma.vmem_to_hbm [thread:$0]  %s231, 64, %s228, %s217
        $region36: #{tpu_custom_call.1} parent=31 // pred_fallthru
          _
      $region32: #{tpu_custom_call.1} parent=5 // pred_fallthru
        _
      %p234 = scmp.le.s32.totalorder 2, %s12
      // Predicated region
      $region37: #{tpu_custom_call.1} parent=5 // pred_check
        %p235 = pneg %p234
      $region38: #{tpu_custom_call.1} parent=5 // pred_check_branch
        %237 = sbr.rel (%p235) target = $region40
      $region39: #{tpu_custom_call.1} parent=5 // pred_region
        %s238 = ssub.s32 %s12, 2
        // Predicated region
        $region41: #{tpu_custom_call.1} parent=39 // pred_check
          %p239 = pneg %p109
        $region42: #{tpu_custom_call.1} parent=39 // pred_check_branch
          %241 = sbr.rel (%p239) target = $region44
        $region43: #{tpu_custom_call.1} parent=39 // pred_region
          %s242 = sand.u32 %s94, 1
          %s243 = scalar_lea.sflag [#allocation3], %s242
          %s244 = sand.u32 %s94, 1
          %s245 = smul.addr %s244, 4
          %s246 = scalar_lea.vmem [#allocation2], %s245
          %247 = dma.done %s243, 64
        $region44: #{tpu_custom_call.1} parent=39 // pred_fallthru
          _
      $region40: #{tpu_custom_call.1} parent=5 // pred_fallthru
        _
    $region6: #{tpu_custom_call.1} parent=1 // loop_footer
      %s16 = sadd.s32 1, %s12
    $region7: #{tpu_custom_call.1} parent=1 // loop_footer_branch
      %11 = sbr.rel target = $region3
    $region8: #{tpu_custom_call.1} parent=1 // loop_exit
      _
    %248 = vsyncpa [#allocation3], 1
    %s249 = scalar_lea.sflag [#allocation3], 1
    %250 = vsyncpa %s249, 1

</llo_original>
